<compile_context>
chip_gen: v5e
topology: v5e:2x2
jax: 0.10.0
libtpu: 0.0.40
codegen_flags: <defaults>
</compile_context>

<pallas_src>
import functools
import math

import jax
import jax.numpy as jnp
from jax.experimental import pallas as pl
from jax.experimental.pallas import tpu as pltpu


# ----------------------------------------------------------------------------
# Plain-JAX glue: affine rotation (affine_grid + grid_sample, align_corners=True,
# bilinear, zero padding).
# TODO(synk): grid_sample is a spatially data-dependent gather; no clean Pallas
# TPU equivalent, kept in plain JAX.
# ----------------------------------------------------------------------------
def affine_grid_sample(x, theta):
    """x: (B, C, H, W) f32, theta: (2, 3) f32. Mimics F.affine_grid+grid_sample."""
    B, C, H, W = x.shape
    xs = jnp.linspace(-1.0, 1.0, W, dtype=jnp.float32)
    ys = jnp.linspace(-1.0, 1.0, H, dtype=jnp.float32)
    base_x, base_y = jnp.meshgrid(xs, ys)          # (H, W) each
    gx = theta[0, 0] * base_x + theta[0, 1] * base_y + theta[0, 2]
    gy = theta[1, 0] * base_x + theta[1, 1] * base_y + theta[1, 2]
    # normalized -> pixel coords (align_corners=True)
    ix = (gx + 1.0) * 0.5 * (W - 1)
    iy = (gy + 1.0) * 0.5 * (H - 1)
    ix0 = jnp.floor(ix)
    iy0 = jnp.floor(iy)
    ix1 = ix0 + 1.0
    iy1 = iy0 + 1.0
    wx1 = ix - ix0
    wx0 = 1.0 - wx1
    wy1 = iy - iy0
    wy0 = 1.0 - wy1

    def gather(iy_, ix_):
        valid = ((ix_ >= 0) & (ix_ <= W - 1) & (iy_ >= 0) & (iy_ <= H - 1))
        ixc = jnp.clip(ix_, 0, W - 1).astype(jnp.int32)
        iyc = jnp.clip(iy_, 0, H - 1).astype(jnp.int32)
        vals = x[:, :, iyc, ixc]                   # (B, C, H, W)
        return vals * valid.astype(x.dtype)

    out = (gather(iy0, ix0) * (wy0 * wx0)
           + gather(iy0, ix1) * (wy0 * wx1)
           + gather(iy1, ix0) * (wy1 * wx0)
           + gather(iy1, ix1) * (wy1 * wx1))
    return out


# ----------------------------------------------------------------------------
# Fused Pallas kernel: one (Cout, KK*Cin) x (KK*Cin, B*HW) MXU matmul per group
# (host-side im2col, batch folded into the lane dim) + bias + SqueezeExcitation
# (pool + VPU/XLU MLP + sigmoid gate).  Output written in final channel layout.
# ----------------------------------------------------------------------------
def group_conv_layer_with_attention(x, conv_w, conv_b, se_w1, se_w2,
                                    group_degrees, kernel_size,
                                    mxu_dtype=jnp.bfloat16):
    """Forward pass equivalent of GroupConvLayerWithAttention.

    x: (B, Cin, H, W); conv_w: (Cout, Cin, k, k); conv_b: (Cout,)
    se_w1: (G, hidden, Cout); se_w2: (G, Cout, hidden)
    returns (B, G*Cout, H, W)

    mxu_dtype: dtype of the conv matmul operands (bf16 recommended on v6e/v7x;
    accumulation and SE math stay f32 either way).
    """
    B, Cin, H, W = x.shape
    Cout = conv_w.shape[0]
    G = len(group_degrees)
    hidden = se_w1.shape[1]
    k = kernel_size
    p = k // 2
    HW = H * W
    KK = k * k
    KC = KK * Cin          # contraction depth of the fused conv matmul
    BHW = B * HW           # MXU N dimension (lane-dense, multiple of 128 here)

    # --- host glue: rotate per group element, host-side im2col -> (KC, B*HW) ---
    # Patch rows ordered (di, dj, cin) to match the weight flattening below;
    # jnp.pad reproduces the conv's zero padding exactly.
    patches = []
    for g in group_degrees:
        rad = g * math.pi / 180.0
        theta = jnp.array([[math.cos(rad), -math.sin(rad), 0.0],
                           [math.sin(rad), math.cos(rad), 0.0]], jnp.float32)
        xg = affine_grid_sample(x, theta)                            # (B,Cin,H,W)
        xg = jnp.pad(xg, ((0, 0), (0, 0), (p, p), (p, p)))           # zero pad
        taps = [xg[:, :, di:di + H, dj:dj + W].reshape(B, Cin, HW)
                for di in range(k) for dj in range(k)]               # KK taps
        pg = jnp.stack(taps, axis=0)                                 # (KK,B,Cin,HW)
        pg = pg.transpose(0, 2, 1, 3).reshape(KC, BHW)               # (KC, B*HW)
        patches.append(pg)
    patches = jnp.stack(patches, axis=0).astype(mxu_dtype)           # (G, KC, B*HW)

    # Conv weights flattened to (Cout, KC) with column ordering (di, dj, cin).
    w_flat = conv_w.transpose(0, 2, 3, 1).reshape(Cout, KC).astype(mxu_dtype)
    b2 = conv_b.reshape(Cout, 1).astype(jnp.float32)
    w1t = jnp.transpose(se_w1, (0, 2, 1)).astype(jnp.float32)        # (G, Cout, hidden)
    w2 = se_w2.astype(jnp.float32)                                   # (G, Cout, hidden)

    inv_hw = 1.0 / HW

    def kernel(patch_ref, w_ref, b_ref, w1_ref, w2_ref, out_ref):
        # patch_ref: (KC, B*HW)     im2col patches of this group (mxu_dtype)
        # w_ref    : (Cout, KC)     flattened conv weights (mxu_dtype)
        # b_ref    : (Cout, 1)      conv bias (f32)
        # w1_ref   : (Cout, hidden) SE fc1 (transposed), this group (f32)
        # w2_ref   : (Cout, hidden) SE fc2, this group (f32)
        # out_ref  : (B, Cout, HW)  lane-dense output slab for this group
        # Single fused MXU matmul for all taps and all batch elements.
        conv_all = jnp.dot(w_ref[...], patch_ref[...],
                           preferred_element_type=jnp.float32)       # (Cout, B*HW)
        conv_all = conv_all + b_ref[...]                              # bias (f32)
        w1 = w1_ref[...]                                              # hoisted
        w2m = w2_ref[...]                                             # hoisted
        for b in range(B):                        # static unroll, B small
            conv = conv_all[:, b * HW:(b + 1) * HW]                   # 128-aligned
            # Squeeze: global average pool over lanes (spatial positions).
            pooled = jnp.sum(conv, axis=1, keepdims=True) * inv_hw    # (Cout, 1)
            # Excitation on VPU/XLU (hidden is tiny -> no MXU dots):
            # h[j]    = relu(sum_c W1[j,c] * pooled[c])
            # gate[c] = sigmoid(sum_j W2[c,j] * h[j])
            h = jnp.maximum(
                jnp.sum(w1 * pooled, axis=0, keepdims=True), 0.0)     # (1, hidden)
            gate = jax.nn.sigmoid(
                jnp.sum(w2m * h, axis=1, keepdims=True))              # (Cout, 1)
            out_ref[b, :, :] = (conv * gate).astype(out_ref.dtype)

    out = pl.pallas_call(
        kernel,
        out_shape=jax.ShapeDtypeStruct((B, G * Cout, HW), jnp.float32),
        grid=(G,),
        in_specs=[
            pl.BlockSpec((pl.Squeezed(), KC, BHW), lambda g: (g, 0, 0)),
            pl.BlockSpec((Cout, KC), lambda g: (0, 0)),
            pl.BlockSpec((Cout, 1), lambda g: (0, 0)),
            pl.BlockSpec((pl.Squeezed(), Cout, hidden), lambda g: (g, 0, 0)),
            pl.BlockSpec((pl.Squeezed(), Cout, hidden), lambda g: (g, 0, 0)),
        ],
        out_specs=pl.BlockSpec((B, Cout, HW), lambda g: (0, g, 0)),
        compiler_params=pltpu.CompilerParams(
            dimension_semantics=("parallel",),     # G shards over v7x's 2 TCs
            vmem_limit_bytes=32 * 1024 * 1024),
    )(patches, w_flat, b2, w1t, w2)

    # (B, G*Cout, HW) -> (B, G*Cout, H, W): pure reshape, no transpose / HBM copy.
    return out.reshape(B, G * Cout, H, W)


# ----------------------------------------------------------------------------
# Pure-JAX reference (for correctness check only)
# ----------------------------------------------------------------------------
def reference(x, conv_w, conv_b, se_w1, se_w2, group_degrees, k):
    p = k // 2
    outs = []
    for gi, g in enumerate(group_degrees):
        rad = g * math.pi / 180.0
        theta = jnp.array([[math.cos(rad), -math.sin(rad), 0.0],
                           [math.sin(rad), math.cos(rad), 0.0]], jnp.float32)
        xt = affine_grid_sample(x, theta)
        conv = jax.lax.conv_general_dilated(
            xt, conv_w, window_strides=(1, 1), padding=[(p, p), (p, p)],
            dimension_numbers=("NCHW", "OIHW", "NCHW"))
        conv = conv + conv_b[None, :, None, None]
        pooled = conv.mean(axis=(2, 3))
        h = jnp.maximum(pooled @ se_w1[gi].T, 0.0)
        y = jax.nn.sigmoid(h @ se_w2[gi].T)
        outs.append(conv * y[:, :, None, None])
    return jnp.concatenate(outs, axis=1)


if __name__ == "__main__":
    # module hyper-parameters (small, consistent with the PyTorch module)
    B, Cin, H, W = 2, 4, 16, 16
    Cout = 32
    K = 3
    group = [0, 90]             # rotation angles in degrees
    reduction = 16
    hidden = Cout // reduction  # = 2
    G = len(group)

    # deterministic parameter init (synthetic, PyTorch-like uniform bounds)
    key = jax.random.PRNGKey(0)
    k1, k2, k3, k4, kx = jax.random.split(key, 5)
    fan_in = Cin * K * K
    bound = 1.0 / math.sqrt(fan_in)
    conv_w = jax.random.uniform(k1, (Cout, Cin, K, K), jnp.float32, -bound, bound)
    conv_b = jax.random.uniform(k2, (Cout,), jnp.float32, -bound, bound)
    se_w1 = jax.random.uniform(k3, (G, hidden, Cout), jnp.float32,
                               -1.0 / math.sqrt(Cout), 1.0 / math.sqrt(Cout))
    se_w2 = jax.random.uniform(k4, (G, Cout, hidden), jnp.float32,
                               -1.0 / math.sqrt(hidden), 1.0 / math.sqrt(hidden))
    x = jax.random.normal(kx, (B, Cin, H, W), jnp.float32)

    ref = jax.block_until_ready(
        reference(x, conv_w, conv_b, se_w1, se_w2, group, K))

    # f32 MXU path: tight check against the lax.conv reference.
    fwd_f32 = jax.jit(functools.partial(group_conv_layer_with_attention,
                                        group_degrees=tuple(group),
                                        kernel_size=K,
                                        mxu_dtype=jnp.float32))
    out_f32 = jax.block_until_ready(fwd_f32(x, conv_w, conv_b, se_w1, se_w2))
    assert out_f32.shape == (B, G * Cout, H, W), out_f32.shape
    assert jnp.allclose(out_f32, ref, rtol=1e-4, atol=1e-4), (
        float(jnp.max(jnp.abs(out_f32 - ref))))

    # bf16 MXU operands (default path): looser tolerance for operand rounding;
    # accumulation and SE math are still f32.
    fwd_bf16 = jax.jit(functools.partial(group_conv_layer_with_attention,
                                         group_degrees=tuple(group),
                                         kernel_size=K))
    out_bf16 = jax.block_until_ready(fwd_bf16(x, conv_w, conv_b, se_w1, se_w2))
    assert out_bf16.shape == (B, G * Cout, H, W), out_bf16.shape
    assert jnp.allclose(out_bf16, ref, rtol=3e-2, atol=3e-2), (
        float(jnp.max(jnp.abs(out_bf16 - ref))))

    print("KERNEL_OK")
</pallas_src>

<mosaic_0001>
module attributes {stable_mosaic.version = 11 : i64} {
  func.func @kernel(%arg0: i32, %arg1: memref<1x36x512xf32, #tpu.memory_space<vmem>>, %arg2: memref<32x36xf32, #tpu.memory_space<vmem>>, %arg3: memref<32x1xf32, #tpu.memory_space<vmem>>, %arg4: memref<1x32x2xf32, #tpu.memory_space<vmem>>, %arg5: memref<1x32x2xf32, #tpu.memory_space<vmem>>, %arg6: memref<2x32x256xf32, #tpu.memory_space<vmem>>) attributes {dimension_semantics = [#tpu.dimension_semantics<parallel>], iteration_bounds = array<i64: 2>, scalar_prefetch = 0 : i64, scratch_operands = 0 : i64, tpu.core_type = #tpu.core_type<tc>, window_params = [{transform_indices = @transform_0, window_bounds = array<i64: 1, 36, 512>}, {pipeline_mode = #tpu.pipeline_mode<synchronous>, transform_indices = @transform_1, window_bounds = array<i64: 32, 36>}, {pipeline_mode = #tpu.pipeline_mode<synchronous>, transform_indices = @transform_2, window_bounds = array<i64: 32, 1>}, {transform_indices = @transform_3, window_bounds = array<i64: 1, 32, 2>}, {transform_indices = @transform_4, window_bounds = array<i64: 1, 32, 2>}, {transform_indices = @transform_5, window_bounds = array<i64: 2, 32, 256>}]} {
    %c0 = arith.constant 0 : index
    %c0_0 = arith.constant 0 : index
    %0 = vector.load %arg2[%c0, %c0_0] : memref<32x36xf32, #tpu.memory_space<vmem>>, vector<32x36xf32>
    %c0_1 = arith.constant 0 : index
    %c0_2 = arith.constant 0 : index
    %c0_3 = arith.constant 0 : index
    %1 = vector.load %arg1[%c0_1, %c0_2, %c0_3] : memref<1x36x512xf32, #tpu.memory_space<vmem>>, vector<1x36x512xf32>
    %2 = vector.shape_cast %1 : vector<1x36x512xf32> to vector<36x512xf32>
    %cst = arith.constant dense<0.000000e+00> : vector<32x512xf32>
    %3 = tpu.matmul %0, %2, %cst {dimension_numbers = #tpu.dot_dimension_numbers<[1], [0], [0], [1], [0, 0, 1, 1], [], []>} : vector<32x36xf32>, vector<36x512xf32>, vector<32x512xf32> -> vector<32x512xf32>
    %c0_4 = arith.constant 0 : index
    %c0_5 = arith.constant 0 : index
    %4 = vector.load %arg3[%c0_4, %c0_5] : memref<32x1xf32, #tpu.memory_space<vmem>>, vector<32x1xf32>
    %5 = vector.broadcast %4 : vector<32x1xf32> to vector<32x512xf32>
    %6 = arith.addf %3, %5 : vector<32x512xf32>
    %c0_6 = arith.constant 0 : index
    %c0_7 = arith.constant 0 : index
    %c0_8 = arith.constant 0 : index
    %7 = vector.load %arg4[%c0_6, %c0_7, %c0_8] : memref<1x32x2xf32, #tpu.memory_space<vmem>>, vector<1x32x2xf32>
    %8 = vector.shape_cast %7 : vector<1x32x2xf32> to vector<32x2xf32>
    %c0_9 = arith.constant 0 : index
    %c0_10 = arith.constant 0 : index
    %c0_11 = arith.constant 0 : index
    %9 = vector.load %arg5[%c0_9, %c0_10, %c0_11] : memref<1x32x2xf32, #tpu.memory_space<vmem>>, vector<1x32x2xf32>
    %10 = vector.shape_cast %9 : vector<1x32x2xf32> to vector<32x2xf32>
    %11 = vector.extract_strided_slice %6 {offsets = [0, 0], sizes = [32, 256], strides = [1, 1]} : vector<32x512xf32> to vector<32x256xf32>
    %cst_12 = arith.constant dense<0.000000e+00> : vector<32xf32>
    %12 = vector.multi_reduction <add>, %11, %cst_12 [1] : vector<32x256xf32> to vector<32xf32>
    %13 = vector.shape_cast %12 : vector<32xf32> to vector<32x1xf32>
    %cst_13 = arith.constant 3.906250e-03 : f32
    %14 = vector.broadcast %cst_13 : f32 to vector<32x1xf32>
    %15 = arith.mulf %13, %14 : vector<32x1xf32>
    %16 = vector.broadcast %15 : vector<32x1xf32> to vector<32x2xf32>
    %17 = arith.mulf %8, %16 : vector<32x2xf32>
    %cst_14 = arith.constant dense<0.000000e+00> : vector<2xf32>
    %18 = vector.multi_reduction <add>, %17, %cst_14 [0] : vector<32x2xf32> to vector<2xf32>
    %19 = vector.shape_cast %18 : vector<2xf32> to vector<1x2xf32>
    %cst_15 = arith.constant 0.000000e+00 : f32
    %20 = vector.broadcast %cst_15 : f32 to vector<1x2xf32>
    %21 = arith.maximumf %19, %20 : vector<1x2xf32>
    %22 = vector.broadcast %21 : vector<1x2xf32> to vector<32x2xf32>
    %23 = arith.mulf %10, %22 : vector<32x2xf32>
    %cst_16 = arith.constant dense<0.000000e+00> : vector<32xf32>
    %24 = vector.multi_reduction <add>, %23, %cst_16 [1] : vector<32x2xf32> to vector<32xf32>
    %25 = vector.shape_cast %24 : vector<32xf32> to vector<32x1xf32>
    %26 = arith.negf %25 : vector<32x1xf32>
    %27 = math.exp %26 : vector<32x1xf32>
    %cst_17 = arith.constant 1.000000e+00 : f32
    %28 = vector.broadcast %cst_17 : f32 to vector<32x1xf32>
    %29 = arith.addf %28, %27 : vector<32x1xf32>
    %30 = arith.divf %28, %29 : vector<32x1xf32>
    %31 = vector.broadcast %30 : vector<32x1xf32> to vector<32x256xf32>
    %32 = arith.mulf %11, %31 : vector<32x256xf32>
    %c0_18 = arith.constant 0 : index
    %c0_19 = arith.constant 0 : index
    %c0_20 = arith.constant 0 : index
    %33 = vector.load %arg6[%c0_18, %c0_19, %c0_20] : memref<2x32x256xf32, #tpu.memory_space<vmem>>, vector<1x32x256xf32>
    %34 = vector.shape_cast %33 : vector<1x32x256xf32> to vector<32x256xf32>
    %35 = vector.shape_cast %32 : vector<32x256xf32> to vector<1x32x256xf32>
    tpu.vector_store %arg6[%c0_18, %c0_19, %c0_20], %35 {strides = array<i32>} : memref<2x32x256xf32, #tpu.memory_space<vmem>>, vector<1x32x256xf32>,
    %36 = vector.extract_strided_slice %6 {offsets = [0, 256], sizes = [32, 256], strides = [1, 1]} : vector<32x512xf32> to vector<32x256xf32>
    %cst_21 = arith.constant dense<0.000000e+00> : vector<32xf32>
    %37 = vector.multi_reduction <add>, %36, %cst_21 [1] : vector<32x256xf32> to vector<32xf32>
    %38 = vector.shape_cast %37 : vector<32xf32> to vector<32x1xf32>
    %cst_22 = arith.constant 3.906250e-03 : f32
    %39 = vector.broadcast %cst_22 : f32 to vector<32x1xf32>
    %40 = arith.mulf %38, %39 : vector<32x1xf32>
    %41 = vector.broadcast %40 : vector<32x1xf32> to vector<32x2xf32>
    %42 = arith.mulf %8, %41 : vector<32x2xf32>
    %cst_23 = arith.constant dense<0.000000e+00> : vector<2xf32>
    %43 = vector.multi_reduction <add>, %42, %cst_23 [0] : vector<32x2xf32> to vector<2xf32>
    %44 = vector.shape_cast %43 : vector<2xf32> to vector<1x2xf32>
    %cst_24 = arith.constant 0.000000e+00 : f32
    %45 = vector.broadcast %cst_24 : f32 to vector<1x2xf32>
    %46 = arith.maximumf %44, %45 : vector<1x2xf32>
    %47 = vector.broadcast %46 : vector<1x2xf32> to vector<32x2xf32>
    %48 = arith.mulf %10, %47 : vector<32x2xf32>
    %cst_25 = arith.constant dense<0.000000e+00> : vector<32xf32>
    %49 = vector.multi_reduction <add>, %48, %cst_25 [1] : vector<32x2xf32> to vector<32xf32>
    %50 = vector.shape_cast %49 : vector<32xf32> to vector<32x1xf32>
    %51 = arith.negf %50 : vector<32x1xf32>
    %52 = math.exp %51 : vector<32x1xf32>
    %cst_26 = arith.constant 1.000000e+00 : f32
    %53 = vector.broadcast %cst_26 : f32 to vector<32x1xf32>
    %54 = arith.addf %53, %52 : vector<32x1xf32>
    %55 = arith.divf %53, %54 : vector<32x1xf32>
    %56 = vector.broadcast %55 : vector<32x1xf32> to vector<32x256xf32>
    %57 = arith.mulf %36, %56 : vector<32x256xf32>
    %c1 = arith.constant 1 : index
    %c0_27 = arith.constant 0 : index
    %c0_28 = arith.constant 0 : index
    %58 = vector.load %arg6[%c1, %c0_27, %c0_28] : memref<2x32x256xf32, #tpu.memory_space<vmem>>, vector<1x32x256xf32>
    %59 = vector.shape_cast %58 : vector<1x32x256xf32> to vector<32x256xf32>
    %60 = vector.shape_cast %57 : vector<32x256xf32> to vector<1x32x256xf32>
    tpu.vector_store %arg6[%c1, %c0_27, %c0_28], %60 {strides = array<i32>} : memref<2x32x256xf32, #tpu.memory_space<vmem>>, vector<1x32x256xf32>,
    return
  }
  func.func @transform_0(%arg0: i32) -> (i32, i32, i32) {
    %c0_i32 = arith.constant 0 : i32
    %c0_i32_0 = arith.constant 0 : i32
    %c0_i32_1 = arith.constant 0 : i32
    return %arg0, %c0_i32, %c0_i32_0 : i32, i32, i32
  }
  func.func @transform_1(%arg0: i32) -> (i32, i32) {
    %c0_i32 = arith.constant 0 : i32
    %c0_i32_0 = arith.constant 0 : i32
    %c0_i32_1 = arith.constant 0 : i32
    return %c0_i32, %c0_i32_0 : i32, i32
  }
  func.func @transform_2(%arg0: i32) -> (i32, i32) {
    %c0_i32 = arith.constant 0 : i32
    %c0_i32_0 = arith.constant 0 : i32
    %c0_i32_1 = arith.constant 0 : i32
    return %c0_i32, %c0_i32_0 : i32, i32
  }
  func.func @transform_3(%arg0: i32) -> (i32, i32, i32) {
    %c0_i32 = arith.constant 0 : i32
    %c0_i32_0 = arith.constant 0 : i32
    %c0_i32_1 = arith.constant 0 : i32
    return %arg0, %c0_i32, %c0_i32_0 : i32, i32, i32
  }
  func.func @transform_4(%arg0: i32) -> (i32, i32, i32) {
    %c0_i32 = arith.constant 0 : i32
    %c0_i32_0 = arith.constant 0 : i32
    %c0_i32_1 = arith.constant 0 : i32
    return %arg0, %c0_i32, %c0_i32_0 : i32, i32, i32
  }
  func.func @transform_5(%arg0: i32) -> (i32, i32, i32) {
    %c0_i32 = arith.constant 0 : i32
    %c0_i32_0 = arith.constant 0 : i32
    %c0_i32_1 = arith.constant 0 : i32
    return %c0_i32, %arg0, %c0_i32_0 : i32, i32, i32
  }
}

</mosaic_0001>

<llo_original>
// kernel: group_conv_layer_with_attention.1
$region0: #{group_conv_layer_with_attention.1}
  #allocation0 [shape = 'u32[]', space=smem, size = 0x4, offset = 0x4, fixed_abs, tag = 'smem constant byte address 0x4 - core index']
  #allocation1 [shape = 'u32[72,128]{1,0:T(1,128)}', space=vmem, size = 0x9000, scoped, tag = 'internal scratch']
  %s0 = inlined_call_operand.vmem [shape: f32[2,36,512], index: 0, kind: input, shape index: {}]
  %s1 = inlined_call_operand.vmem [shape: f32[32,36], index: 1, kind: input, shape index: {}]
  %s2 = inlined_call_operand.vmem [shape: f32[32,1], index: 2, kind: input, shape index: {}]
  %s3 = inlined_call_operand.vmem [shape: f32[2,32,2], index: 3, kind: input, shape index: {}]
  %s4 = inlined_call_operand.vmem [shape: f32[2,32,2], index: 4, kind: input, shape index: {}]
  %s5 = inlined_call_operand.vmem [shape: f32[2,64,256], index: 5, kind: output, shape index: {}]
  %s6 = sld [smem:[#allocation0]]
  $region72: #{group_conv_layer_with_attention.1} parent=0
    _
  %s8 = ssub.s32 1, %s6
  %s9 = scalar_select 0, %s8, %s6
  $region1: #{group_conv_layer_with_attention.1} parent=0
    #allocation2 [shape = 'u8[131072]{0}', space=vmem, size = 0x20000, scoped, tag = 'output window, operand 0']
    loop: start=0, step=1, limit=4
    $region2: #{group_conv_layer_with_attention.1} parent=1 // loop_pre_header
      _
    $region3: #{group_conv_layer_with_attention.1} parent=1 // loop_header
      %s11 = sphi 0, %s15
      %p12 = scmp.ge.s32.totalorder %s11, 4
      %s21 = sphi 0, %s23
      %s24 = sphi 0, %s21
      %s25 = sphi 0, %s24
      %s41 = sphi 0, %s25
      %s45 = sphi 0, %s45
      %s47 = sphi 0, %s45
      %s48 = sphi 0, %s47
      %s62 = sphi 0, %s48
      %s66 = sphi 0, %s66
      %s68 = sphi 0, %s66
      %s69 = sphi 0, %s68
      %s83 = sphi 0, %s69
      %s89 = sphi 0, %s91
      %s92 = sphi 0, %s89
      %s93 = sphi 0, %s92
      %s109 = sphi 0, %s93
      %s115 = sphi 0, %s117
      %s118 = sphi 0, %s115
      %s119 = sphi 0, %s118
      %s135 = sphi 0, %s119
      %s141 = sphi 0, %s143
      %s144 = sphi 0, %s141
      %s145 = sphi 0, %s144
      %s161 = sphi 0, %s145
    $region4: #{group_conv_layer_with_attention.1} parent=1 // loop_header_branch
      %14 = sbr.rel (%p12) target = $region8
    $region5: #{group_conv_layer_with_attention.1} parent=1 // loop_body
      %s16 = ssub.s32 %s11, 1
      %s17 = ssub.s32 %s11, 2
      %s18 = sadd.s32 %s11, 1
      %s19 = ssub.s32 %s11, %s18
      %p20 = scmp.eq.s32.totalorder %s19, 0
      %s22 = sadd.s32 %s21, 1
      %s23 = scalar_select %p20, %s21, %s22
      %p26 = pneg %p20
      %p27 = scmp.eq.s32.totalorder %s11, 1
      %p28 = por %p26, %p27
      %p29 = scmp.ne.s32.totalorder %s21, %s24
      %p30 = scmp.eq.s32.totalorder %s11, 0
      %p31 = por %p29, %p30
      %p32 = scmp.ne.s32.totalorder %s21, %s24
      %p33 = scmp.eq.s32.totalorder %s16, 1
      %p34 = por %p32, %p33
      %p35 = scmp.ne.s32.totalorder %s24, %s25
      %p36 = scmp.eq.s32.totalorder %s16, 0
      %p37 = por %p35, %p36
      %p38 = scmp.ne.s32.totalorder %s24, %s25
      %p39 = scmp.eq.s32.totalorder %s17, 1
      %p40 = por %p38, %p39
      %p42 = scmp.ne.s32.totalorder %s25, %s41
      %p43 = scmp.eq.s32.totalorder %s17, 0
      %p44 = por %p42, %p43
      %s46 = sadd.s32 %s45, 1
      %p49 = scmp.eq.s32.totalorder %s11, 1
      %p50 = scmp.ne.s32.totalorder %s45, %s47
      %p51 = scmp.eq.s32.totalorder %s11, 0
      %p52 = por %p50, %p51
      %p53 = scmp.ne.s32.totalorder %s45, %s47
      %p54 = scmp.eq.s32.totalorder %s16, 1
      %p55 = por %p53, %p54
      %p56 = scmp.ne.s32.totalorder %s47, %s48
      %p57 = scmp.eq.s32.totalorder %s16, 0
      %p58 = por %p56, %p57
      %p59 = scmp.ne.s32.totalorder %s47, %s48
      %p60 = scmp.eq.s32.totalorder %s17, 1
      %p61 = por %p59, %p60
      %p63 = scmp.ne.s32.totalorder %s48, %s62
      %p64 = scmp.eq.s32.totalorder %s17, 0
      %p65 = por %p63, %p64
      %s67 = sadd.s32 %s66, 1
      %p70 = scmp.eq.s32.totalorder %s11, 1
      %p71 = scmp.ne.s32.totalorder %s66, %s68
      %p72 = scmp.eq.s32.totalorder %s11, 0
      %p73 = por %p71, %p72
      %p74 = scmp.ne.s32.totalorder %s66, %s68
      %p75 = scmp.eq.s32.totalorder %s16, 1
      %p76 = por %p74, %p75
      %p77 = scmp.ne.s32.totalorder %s68, %s69
      %p78 = scmp.eq.s32.totalorder %s16, 0
      %p79 = por %p77, %p78
      %p80 = scmp.ne.s32.totalorder %s68, %s69
      %p81 = scmp.eq.s32.totalorder %s17, 1
      %p82 = por %p80, %p81
      %p84 = scmp.ne.s32.totalorder %s69, %s83
      %p85 = scmp.eq.s32.totalorder %s17, 0
      %p86 = por %p84, %p85
      %s87 = ssub.s32 %s11, %s18
      %p88 = scmp.eq.s32.totalorder %s87, 0
      %s90 = sadd.s32 %s89, 1
      %s91 = scalar_select %p88, %s89, %s90
      %p94 = pneg %p88
      %p95 = scmp.eq.s32.totalorder %s11, 1
      %p96 = por %p94, %p95
      %p97 = scmp.ne.s32.totalorder %s89, %s92
      %p98 = scmp.eq.s32.totalorder %s11, 0
      %p99 = por %p97, %p98
      %p100 = scmp.ne.s32.totalorder %s89, %s92
      %p101 = scmp.eq.s32.totalorder %s16, 1
      %p102 = por %p100, %p101
      %p103 = scmp.ne.s32.totalorder %s92, %s93
      %p104 = scmp.eq.s32.totalorder %s16, 0
      %p105 = por %p103, %p104
      %p106 = scmp.ne.s32.totalorder %s92, %s93
      %p107 = scmp.eq.s32.totalorder %s17, 1
      %p108 = por %p106, %p107
      %p110 = scmp.ne.s32.totalorder %s93, %s109
      %p111 = scmp.eq.s32.totalorder %s17, 0
      %p112 = por %p110, %p111
      %s113 = ssub.s32 %s11, %s18
      %p114 = scmp.eq.s32.totalorder %s113, 0
      %s116 = sadd.s32 %s115, 1
      %s117 = scalar_select %p114, %s115, %s116
      %p120 = pneg %p114
      %p121 = scmp.eq.s32.totalorder %s11, 1
      %p122 = por %p120, %p121
      %p123 = scmp.ne.s32.totalorder %s115, %s118
      %p124 = scmp.eq.s32.totalorder %s11, 0
      %p125 = por %p123, %p124
      %p126 = scmp.ne.s32.totalorder %s115, %s118
      %p127 = scmp.eq.s32.totalorder %s16, 1
      %p128 = por %p126, %p127
      %p129 = scmp.ne.s32.totalorder %s118, %s119
      %p130 = scmp.eq.s32.totalorder %s16, 0
      %p131 = por %p129, %p130
      %p132 = scmp.ne.s32.totalorder %s118, %s119
      %p133 = scmp.eq.s32.totalorder %s17, 1
      %p134 = por %p132, %p133
      %p136 = scmp.ne.s32.totalorder %s119, %s135
      %p137 = scmp.eq.s32.totalorder %s17, 0
      %p138 = por %p136, %p137
      %s139 = ssub.s32 %s11, %s18
      %p140 = scmp.eq.s32.totalorder %s139, 0
      %s142 = sadd.s32 %s141, 1
      %s143 = scalar_select %p140, %s141, %s142
      %p146 = pneg %p140
      %p147 = scmp.eq.s32.totalorder %s11, 1
      %p148 = por %p146, %p147
      %p149 = scmp.ne.s32.totalorder %s141, %s144
      %p150 = scmp.eq.s32.totalorder %s11, 0
      %p151 = por %p149, %p150
      %p152 = scmp.ne.s32.totalorder %s141, %s144
      %p153 = scmp.eq.s32.totalorder %s16, 1
      %p154 = por %p152, %p153
      %p155 = scmp.ne.s32.totalorder %s144, %s145
      %p156 = scmp.eq.s32.totalorder %s16, 0
      %p157 = por %p155, %p156
      %p158 = scmp.ne.s32.totalorder %s144, %s145
      %p159 = scmp.eq.s32.totalorder %s17, 1
      %p160 = por %p158, %p159
      %p162 = scmp.ne.s32.totalorder %s145, %s161
      %p163 = scmp.eq.s32.totalorder %s17, 0
      %p164 = por %p162, %p163
      %p165 = scmp.le.s32.totalorder 1, %s11
      %p166 = scmp.lt.s32.totalorder %s11, 3
      %p167 = pnand %p165, %p166
      %p168 = pneg %p167
      // Predicated region
      $region9: #{group_conv_layer_with_attention.1} parent=5 // pred_check
        _
      $region10: #{group_conv_layer_with_attention.1} parent=5 // pred_check_branch
        %170 = sbr.rel (%p167) target = $region12
      $region11: #{group_conv_layer_with_attention.1} parent=5 // pred_region
        %s171 = ssub.s32 %s11, 1
        // Predicated region
        $region13: #{group_conv_layer_with_attention.1} parent=11 // pred_check
          %p172 = pneg %p58
        $region14: #{group_conv_layer_with_attention.1} parent=11 // pred_check_branch
          %174 = sbr.rel (%p172) target = $region16
        $region15: #{group_conv_layer_with_attention.1} parent=11 // pred_region
          _
        $region16: #{group_conv_layer_with_attention.1} parent=11 // pred_fallthru
          _
        // Predicated region
        $region17: #{group_conv_layer_with_attention.1} parent=11 // pred_check
          %p175 = pneg %p79
        $region18: #{group_conv_layer_with_attention.1} parent=11 // pred_check_branch
          %177 = sbr.rel (%p175) target = $region20
        $region19: #{group_conv_layer_with_attention.1} parent=11 // pred_region
          _
        $region20: #{group_conv_layer_with_attention.1} parent=11 // pred_fallthru
          _
      $region12: #{group_conv_layer_with_attention.1} parent=5 // pred_fallthru
        _
      %p178 = scmp.lt.s32.totalorder %s11, 2
      // Predicated region
      $region21: #{group_conv_layer_with_attention.1} parent=5 // pred_check
        %p179 = pneg %p178
      $region22: #{group_conv_layer_with_attention.1} parent=5 // pred_check_branch
        %181 = sbr.rel (%p179) target = $region24
      $region23: #{group_conv_layer_with_attention.1} parent=5 // pred_region
        // Predicated region
        $region25: #{group_conv_layer_with_attention.1} parent=23 // pred_check
          %p182 = pneg %p31
        $region26: #{group_conv_layer_with_attention.1} parent=23 // pred_check_branch
          %184 = sbr.rel (%p182) target = $region28
        $region27: #{group_conv_layer_with_attention.1} parent=23 // pred_region
          %p185 = scmp.lt.s32.totalorder %s11, 1
          %s186 = scalar_select %p185, %s11, 1
          %s187 = smul.addr %s186, 20
          %s188 = smul.addr %s187, 8
          %s189 = scalar_lea.vmem %s0, %s188
        $region28: #{group_conv_layer_with_attention.1} parent=23 // pred_fallthru
          _
        // Predicated region
        $region29: #{group_conv_layer_with_attention.1} parent=23 // pred_check
          %p190 = pneg %p99
        $region30: #{group_conv_layer_with_attention.1} parent=23 // pred_check_branch
          %192 = sbr.rel (%p190) target = $region32
        $region31: #{group_conv_layer_with_attention.1} parent=23 // pred_region
          %p193 = scmp.lt.s32.totalorder %s11, 1
          %s194 = scalar_select %p193, %s11, 1
          %s195 = smul.addr %s194, 4
          %s196 = smul.addr %s195, 8
          %s197 = scalar_lea.vmem %s3, %s196
        $region32: #{group_conv_layer_with_attention.1} parent=23 // pred_fallthru
          _
        // Predicated region
        $region33: #{group_conv_layer_with_attention.1} parent=23 // pred_check
          %p198 = pneg %p125
        $region34: #{group_conv_layer_with_attention.1} parent=23 // pred_check_branch
          %200 = sbr.rel (%p198) target = $region36
        $region35: #{group_conv_layer_with_attention.1} parent=23 // pred_region
          %p201 = scmp.lt.s32.totalorder %s11, 1
          %s202 = scalar_select %p201, %s11, 1
          %s203 = smul.addr %s202, 4
          %s204 = smul.addr %s203, 8
          %s205 = scalar_lea.vmem %s4, %s204
        $region36: #{group_conv_layer_with_attention.1} parent=23 // pred_fallthru
          _
      $region24: #{group_conv_layer_with_attention.1} parent=5 // pred_fallthru
        _
      %p206 = scmp.le.s32.totalorder 1, %s11
      %p207 = scmp.lt.s32.totalorder %s11, 3
      %p208 = pnand %p206, %p207
      %p209 = pneg %p208
      // Predicated region
      $region37: #{group_conv_layer_with_attention.1} parent=5 // pred_check
        _
      $region38: #{group_conv_layer_with_attention.1} parent=5 // pred_check_branch
        %211 = sbr.rel (%p208) target = $region40
      $region39: #{group_conv_layer_with_attention.1} parent=5 // pred_region
        %s212 = ssub.s32 %s11, 1
        %p213 = scmp.lt.s32.totalorder %s16, 1
        %s214 = scalar_select %p213, %s16, 1
        %s215 = smul.addr %s214, 20
        %s216 = smul.addr %s215, 8
        %s217 = scalar_lea.vmem %s0, %s216
        %p218 = pneg %p37
        %p219 = pneg %p34
        %p220 = pneg %p58
        %p221 = pneg %p55
        %p222 = pneg %p79
        %p223 = pneg %p76
        %p224 = scmp.lt.s32.totalorder %s16, 1
        %s225 = scalar_select %p224, %s16, 1
        %s226 = smul.addr %s225, 4
        %s227 = smul.addr %s226, 8
        %s228 = scalar_lea.vmem %s3, %s227
        %p229 = pneg %p105
        %p230 = pneg %p102
        %p231 = scmp.lt.s32.totalorder %s16, 1
        %s232 = scalar_select %p231, %s16, 1
        %s233 = smul.addr %s232, 4
        %s234 = smul.addr %s233, 8
        %s235 = scalar_lea.vmem %s4, %s234
        %p236 = pneg %p131
        %p237 = pneg %p128
        %p238 = pneg %p157
        %p239 = pneg %p154
        %s240 = sand.u32 %s144, 1
        %s241 = sand.u32 %s144, 1
        %s242 = smul.addr %s241, 128
        %s243 = scalar_lea.vmem [#allocation2], %s242
        %p244 = scmp.lt.s32.totalorder %s16, 1
        %s245 = scalar_select %p244, %s16, 1
        %s246 = smul.addr %s245, 20
        %s247 = smul.addr %s246, 8
        %s248 = scalar_lea.vmem %s0, %s247
        %p249 = scmp.lt.s32.totalorder %s16, 1
        %s250 = scalar_select %p249, %s16, 1
        %s251 = smul.addr %s250, 4
        %s252 = smul.addr %s251, 8
        %s253 = scalar_lea.vmem %s3, %s252
        %p254 = scmp.lt.s32.totalorder %s16, 1
        %s255 = scalar_select %p254, %s16, 1
        %s256 = smul.addr %s255, 4
        %s257 = smul.addr %s256, 8
        %s258 = scalar_lea.vmem %s4, %s257
        %s259 = smul.u32 4, %s16
        %v260 = vld [vmem:[%s1] sm:$0xff]
        %v261 = vld [vmem:[%s1 + $0x8] sm:$0xff]
        %v262 = vld [vmem:[%s1 + $0x10] sm:$0xff]
        %v263 = vld [vmem:[%s1 + $0x18] sm:$0xff]
        %v264 = vld [vmem:[%s248] sm:$0xff]
        %v265 = vld [vmem:[%s248 + $0x8] sm:$0xff]
        %v266 = vld [vmem:[%s248 + $0x10] sm:$0xff]
        %v267 = vld [vmem:[%s248 + $0x18] sm:$0xff]
        %v268 = vld [vmem:[%s248 + $0x20] sm:$0xff]
        %v269 = vld [vmem:[%s248 + $0x28] sm:$0xff]
        %v270 = vld [vmem:[%s248 + $0x30] sm:$0xff]
        %v271 = vld [vmem:[%s248 + $0x38] sm:$0xff]
        %v272 = vld [vmem:[%s248 + $0x40] sm:$0xff]
        %v273 = vld [vmem:[%s248 + $0x48] sm:$0xff]
        %v274 = vld [vmem:[%s248 + $0x50] sm:$0xff]
        %v275 = vld [vmem:[%s248 + $0x58] sm:$0xff]
        %v276 = vld [vmem:[%s248 + $0x60] sm:$0xff]
        %v277 = vld [vmem:[%s248 + $0x68] sm:$0xff]
        %v278 = vld [vmem:[%s248 + $0x70] sm:$0xff]
        %v279 = vld [vmem:[%s248 + $0x78] sm:$0xff]
        %v280 = vld [vmem:[%s248 + $0x80] sm:$0xf]
        %v281 = vld [vmem:[%s248 + $0x88] sm:$0xf]
        %v282 = vld [vmem:[%s248 + $0x90] sm:$0xf]
        %v283 = vld [vmem:[%s248 + $0x98] sm:$0xf]
        %v284 = vld [vmem:[%s2] sm:$0xff]
        %v285 = vld [vmem:[%s2 + $0x8] sm:$0xff]
        %v286 = vld [vmem:[%s2 + $0x10] sm:$0xff]
        %v287 = vld [vmem:[%s2 + $0x18] sm:$0xff]
        %289 = vset.pattern.permute.xlu0 0
        %290 = vperm.xlu0 %289, %v284
        %v291 = vpop.permute.xlu0 %290
        %294 = vset.pattern.permute.xlu0 0
        %295 = vperm.xlu0 %294, %v285
        %v296 = vpop.permute.xlu0 %295
        %299 = vset.pattern.permute.xlu0 0
        %300 = vperm.xlu0 %299, %v286
        %v301 = vpop.permute.xlu0 %300
        %304 = vset.pattern.permute.xlu0 0
        %305 = vperm.xlu0 %304, %v287
        %v306 = vpop.permute.xlu0 %305
        %vm308 = vcmask 293888
        %v310 = vsel %vm308, %v260, 0
        %v313 = vsel %vm308, %v261, 0
        %v316 = vsel %vm308, %v262, 0
        %v319 = vsel %vm308, %v263, 0
        %vm321 = vcmask 1043456
        %v323 = vsel %vm321, %v280, 0
        %v326 = vsel %vm321, %v281, 0
        %v329 = vsel %vm321, %v282, 0
        %v332 = vsel %vm321, %v283, 0
        %334 = vmatpush.msra.mxu0 0.0
        %335 = vmatpush.msra.mxu0 0.0
        %336 = vmatpush.msra.mxu0 0.0
        %337 = vmatpush.msra.mxu0 0.0
        %338 = vmatpush.msra.mxu0 0.0
        %339 = vmatpush.msra.mxu0 0.0
        %340 = vmatpush.msra.mxu0 0.0
        %341 = vmatpush.msra.mxu0 0.0
        %342 = vmatpush.msra.mxu0 0.0
        %343 = vmatpush.msra.mxu0 0.0
        %344 = vmatpush.msra.mxu0 0.0
        %345 = vmatpush.msra.mxu0 %v323
        %346 = vmatpush.msra.mxu0 %v276
        %347 = vmatpush.msra.mxu0 %v272
        %348 = vmatpush.msra.mxu0 %v268
        %349 = vmatpush.msra.mxu0 %v264
        %350 = vmatmul.f32.gmra.mxu0 %v310
        %v351 = vpop.f32.mrf.mxu0
        %v352 = vadd.f32 %v291, %v351
        %353 = vmatmul.f32.gmra.mxu0 %v313
        %v354 = vpop.f32.mrf.mxu0
        %v355 = vadd.f32 %v296, %v354
        %356 = vmatmul.f32.gmra.mxu0 %v316
        %v357 = vpop.f32.mrf.mxu0
        %v358 = vadd.f32 %v301, %v357
        %359 = vmatmul.f32.gmra.mxu0 %v319
        %v360 = vpop.f32.mrf.mxu0
        %v361 = vadd.f32 %v306, %v360
        %362 = vdwg.mxu0
        %363 = vmatpush.msra.mxu0 0.0
        %364 = vmatpush.msra.mxu0 0.0
        %365 = vmatpush.msra.mxu0 0.0
        %366 = vmatpush.msra.mxu0 0.0
        %367 = vmatpush.msra.mxu0 0.0
        %368 = vmatpush.msra.mxu0 0.0
        %369 = vmatpush.msra.mxu0 0.0
        %370 = vmatpush.msra.mxu0 0.0
        %371 = vmatpush.msra.mxu0 0.0
        %372 = vmatpush.msra.mxu0 0.0
        %373 = vmatpush.msra.mxu0 0.0
        %374 = vmatpush.msra.mxu0 %v326
        %375 = vmatpush.msra.mxu0 %v277
        %376 = vmatpush.msra.mxu0 %v273
        %377 = vmatpush.msra.mxu0 %v269
        %378 = vmatpush.msra.mxu0 %v265
        %379 = vmatmul.f32.gmra.mxu0 %v310
        %v380 = vpop.f32.mrf.mxu0
        %v381 = vadd.f32 %v291, %v380
        %382 = vmatmul.f32.gmra.mxu0 %v313
        %v383 = vpop.f32.mrf.mxu0
        %v384 = vadd.f32 %v296, %v383
        %385 = vmatmul.f32.gmra.mxu0 %v316
        %v386 = vpop.f32.mrf.mxu0
        %v387 = vadd.f32 %v301, %v386
        %388 = vmatmul.f32.gmra.mxu0 %v319
        %v389 = vpop.f32.mrf.mxu0
        %v390 = vadd.f32 %v306, %v389
        %391 = vdwg.mxu0
        %392 = vmatpush.msra.mxu0 0.0
        %393 = vmatpush.msra.mxu0 0.0
        %394 = vmatpush.msra.mxu0 0.0
        %395 = vmatpush.msra.mxu0 0.0
        %396 = vmatpush.msra.mxu0 0.0
        %397 = vmatpush.msra.mxu0 0.0
        %398 = vmatpush.msra.mxu0 0.0
        %399 = vmatpush.msra.mxu0 0.0
        %400 = vmatpush.msra.mxu0 0.0
        %401 = vmatpush.msra.mxu0 0.0
        %402 = vmatpush.msra.mxu0 0.0
        %403 = vmatpush.msra.mxu0 %v329
        %404 = vmatpush.msra.mxu0 %v278
        %405 = vmatpush.msra.mxu0 %v274
        %406 = vmatpush.msra.mxu0 %v270
        %407 = vmatpush.msra.mxu0 %v266
        %408 = vmatmul.f32.gmra.mxu0 %v310
        %v409 = vpop.f32.mrf.mxu0
        %v410 = vadd.f32 %v291, %v409
        %411 = vmatmul.f32.gmra.mxu0 %v313
        %v412 = vpop.f32.mrf.mxu0
        %v413 = vadd.f32 %v296, %v412
        %414 = vmatmul.f32.gmra.mxu0 %v316
        %v415 = vpop.f32.mrf.mxu0
        %v416 = vadd.f32 %v301, %v415
        %417 = vmatmul.f32.gmra.mxu0 %v319
        %v418 = vpop.f32.mrf.mxu0
        %v419 = vadd.f32 %v306, %v418
        %420 = vdwg.mxu0
        %421 = vmatpush.msra.mxu0 0.0
        %422 = vmatpush.msra.mxu0 0.0
        %423 = vmatpush.msra.mxu0 0.0
        %424 = vmatpush.msra.mxu0 0.0
        %425 = vmatpush.msra.mxu0 0.0
        %426 = vmatpush.msra.mxu0 0.0
        %427 = vmatpush.msra.mxu0 0.0
        %428 = vmatpush.msra.mxu0 0.0
        %429 = vmatpush.msra.mxu0 0.0
        %430 = vmatpush.msra.mxu0 0.0
        %431 = vmatpush.msra.mxu0 0.0
        %432 = vmatpush.msra.mxu0 %v332
        %433 = vmatpush.msra.mxu0 %v279
        %434 = vmatpush.msra.mxu0 %v275
        %435 = vmatpush.msra.mxu0 %v271
        %436 = vmatpush.msra.mxu0 %v267
        %437 = vmatmul.f32.gmra.mxu0 %v310
        %v438 = vpop.f32.mrf.mxu0
        %v439 = vadd.f32 %v291, %v438
        %440 = vmatmul.f32.gmra.mxu0 %v313
        %v441 = vpop.f32.mrf.mxu0
        %v442 = vadd.f32 %v296, %v441
        %443 = vmatmul.f32.gmra.mxu0 %v316
        %v444 = vpop.f32.mrf.mxu0
        %v445 = vadd.f32 %v301, %v444
        %446 = vmatmul.f32.gmra.mxu0 %v319
        %v447 = vpop.f32.mrf.mxu0
        %v448 = vadd.f32 %v306, %v447
        %449 = vdwg.mxu0
        %v450 = vld [vmem:[%s253] sm:$0xff]
        %v451 = vld [vmem:[%s253 + $0x8] sm:$0xff]
        %v452 = vld [vmem:[%s253 + $0x10] sm:$0xff]
        %v453 = vld [vmem:[%s253 + $0x18] sm:$0xff]
        %v454 = vld [vmem:[%s258] sm:$0xff]
        %v455 = vld [vmem:[%s258 + $0x8] sm:$0xff]
        %v456 = vld [vmem:[%s258 + $0x10] sm:$0xff]
        %v457 = vld [vmem:[%s258 + $0x18] sm:$0xff]
        %v458 = vadd.f32 %v352, %v381
        %459 = vadd.xlane.f32.xlu0 %v458
        %v460 = vpop.xlane.xlu0 %459
        %v461 = vadd.f32 %v355, %v384
        %462 = vadd.xlane.f32.xlu0 %v461
        %v463 = vpop.xlane.xlu0 %462
        %v464 = vadd.f32 %v358, %v387
        %465 = vadd.xlane.f32.xlu0 %v464
        %v466 = vpop.xlane.xlu0 %465
        %v467 = vadd.f32 %v361, %v390
        %468 = vadd.xlane.f32.xlu0 %v467
        %v469 = vpop.xlane.xlu0 %468
        %v470 = vmul.f32 %v460, 0.00390625
        %v471 = vmul.f32 %v463, 0.00390625
        %v472 = vmul.f32 %v466, 0.00390625
        %v473 = vmul.f32 %v469, 0.00390625
        %v474 = vmul.f32 %v450, %v470
        %v475 = vmul.f32 %v451, %v471
        %v476 = vmul.f32 %v452, %v472
        %v477 = vmul.f32 %v453, %v473
        %vm478 = vcmask 15360
        %v479 = vsel %vm478, %v474, 0.0
        %v480 = vsel %vm478, %v475, 0.0
        %v481 = vadd.f32 %v479, %v480
        %v482 = vsel %vm478, %v476, 0.0
        %v483 = vadd.f32 %v481, %v482
        %v484 = vsel %vm478, %v477, 0.0
        %v485 = vadd.f32 %v483, %v484
        %v486 = vrot.slane %v485, 4
        %v487 = vadd.f32 %v485, %v486
        %v488 = vrot.slane %v487, 2
        %v489 = vadd.f32 %v487, %v488
        %v490 = vrot.slane %v489, 1
        %v491 = vadd.f32 %v489, %v490
        %v492 = vmax.f32 %v491, 0.0
        %v493 = vmul.f32 %v454, %v492
        %v494 = vmul.f32 %v455, %v492
        %v495 = vmul.f32 %v456, %v492
        %v496 = vmul.f32 %v457, %v492
        %v497 = vsel %vm478, %v493, 0.0
        %498 = vadd.xlane.f32.xlu0 %v497
        %v499 = vpop.xlane.xlu0 %498
        %v500 = vsel %vm478, %v494, 0.0
        %501 = vadd.xlane.f32.xlu0 %v500
        %v502 = vpop.xlane.xlu0 %501
        %v503 = vsel %vm478, %v495, 0.0
        %504 = vadd.xlane.f32.xlu0 %v503
        %v505 = vpop.xlane.xlu0 %504
        %v506 = vsel %vm478, %v496, 0.0
        %507 = vadd.xlane.f32.xlu0 %v506
        %v508 = vpop.xlane.xlu0 %507
        %v509 = vxor.u32 %v499, 2147483648
        %v510 = vxor.u32 %v502, 2147483648
        %v511 = vxor.u32 %v505, 2147483648
        %v512 = vxor.u32 %v508, 2147483648
        %v513 = vmul.f32 %v509, 1.442695
        %v514 = vpow.pop %v513
        %v515 = vmul.f32 %v510, 1.442695
        %v516 = vpow.pop %v515
        %v517 = vmul.f32 %v511, 1.442695
        %v518 = vpow.pop %v517
        %v519 = vmul.f32 %v512, 1.442695
        %v520 = vpow.pop %v519
        %v521 = vadd.f32 %v514, 1.0
        %v522 = vadd.f32 %v516, 1.0
        %v523 = vadd.f32 %v518, 1.0
        %v524 = vadd.f32 %v520, 1.0
        %v525 = vrcp.pop %v521
        %v526 = vmul.f32 %v521, %v525
        %v527 = vsub.f32 1.0, %v526
        %v528 = vmul.f32 %v525, %v527
        %v529 = vadd.f32 %v525, %v528
        %vm530 = vweird.f32 %v521
        %vm531 = vweird.f32 %v525
        %vm532 = vmor %vm530, %vm531
        %v533 = vsel %vm532, %v525, %v529
        %v534 = vand.u32 2147483647, %v521
        %vm535 = vcmp.eq.f32.partialorder %v534, 8.507059e+37
        %v536 = vand.u32 %v521, 2147483648
        %v537 = vor.u32 1.1754944e-38, %v536
        %v538 = vsel %vm535, %v537, %v533
        %v539 = vmul.f32 1.0, %v538
        %v540 = vrcp.pop %v522
        %v541 = vmul.f32 %v522, %v540
        %v542 = vsub.f32 1.0, %v541
        %v543 = vmul.f32 %v540, %v542
        %v544 = vadd.f32 %v540, %v543
        %vm545 = vweird.f32 %v522
        %vm546 = vweird.f32 %v540
        %vm547 = vmor %vm545, %vm546
        %v548 = vsel %vm547, %v540, %v544
        %v549 = vand.u32 2147483647, %v522
        %vm550 = vcmp.eq.f32.partialorder %v549, 8.507059e+37
        %v551 = vand.u32 %v522, 2147483648
        %v552 = vor.u32 1.1754944e-38, %v551
        %v553 = vsel %vm550, %v552, %v548
        %v554 = vmul.f32 1.0, %v553
        %v555 = vrcp.pop %v523
        %v556 = vmul.f32 %v523, %v555
        %v557 = vsub.f32 1.0, %v556
        %v558 = vmul.f32 %v555, %v557
        %v559 = vadd.f32 %v555, %v558
        %vm560 = vweird.f32 %v523
        %vm561 = vweird.f32 %v555
        %vm562 = vmor %vm560, %vm561
        %v563 = vsel %vm562, %v555, %v559
        %v564 = vand.u32 2147483647, %v523
        %vm565 = vcmp.eq.f32.partialorder %v564, 8.507059e+37
        %v566 = vand.u32 %v523, 2147483648
        %v567 = vor.u32 1.1754944e-38, %v566
        %v568 = vsel %vm565, %v567, %v563
        %v569 = vmul.f32 1.0, %v568
        %v570 = vrcp.pop %v524
        %v571 = vmul.f32 %v524, %v570
        %v572 = vsub.f32 1.0, %v571
        %v573 = vmul.f32 %v570, %v572
        %v574 = vadd.f32 %v570, %v573
        %vm575 = vweird.f32 %v524
        %vm576 = vweird.f32 %v570
        %vm577 = vmor %vm575, %vm576
        %v578 = vsel %vm577, %v570, %v574
        %v579 = vand.u32 2147483647, %v524
        %vm580 = vcmp.eq.f32.partialorder %v579, 8.507059e+37
        %v581 = vand.u32 %v524, 2147483648
        %v582 = vor.u32 1.1754944e-38, %v581
        %v583 = vsel %vm580, %v582, %v578
        %v584 = vmul.f32 1.0, %v583
        %v585 = vmul.f32 %v352, %v539
        %v586 = vmul.f32 %v381, %v539
        %v587 = vmul.f32 %v355, %v554
        %v588 = vmul.f32 %v384, %v554
        %v589 = vmul.f32 %v358, %v569
        %v590 = vmul.f32 %v387, %v569
        %v591 = vmul.f32 %v361, %v584
        %v592 = vmul.f32 %v390, %v584
        %593 = vst [vmem:[%s243] sm:$0xff] %v585
        %594 = vst [vmem:[%s243 + $0x8] sm:$0xff] %v586
        %595 = vst [vmem:[%s243 + $0x10] sm:$0xff] %v587
        %596 = vst [vmem:[%s243 + $0x18] sm:$0xff] %v588
        %597 = vst [vmem:[%s243 + $0x20] sm:$0xff] %v589
        %598 = vst [vmem:[%s243 + $0x28] sm:$0xff] %v590
        %599 = vst [vmem:[%s243 + $0x30] sm:$0xff] %v591
        %600 = vst [vmem:[%s243 + $0x38] sm:$0xff] %v592
        %v601 = vadd.f32 %v410, %v439
        %602 = vadd.xlane.f32.xlu0 %v601
        %v603 = vpop.xlane.xlu0 %602
        %v604 = vadd.f32 %v413, %v442
        %605 = vadd.xlane.f32.xlu0 %v604
        %v606 = vpop.xlane.xlu0 %605
        %v607 = vadd.f32 %v416, %v445
        %608 = vadd.xlane.f32.xlu0 %v607
        %v609 = vpop.xlane.xlu0 %608
        %v610 = vadd.f32 %v419, %v448
        %611 = vadd.xlane.f32.xlu0 %v610
        %v612 = vpop.xlane.xlu0 %611
        %v613 = vmul.f32 %v603, 0.00390625
        %v614 = vmul.f32 %v606, 0.00390625
        %v615 = vmul.f32 %v609, 0.00390625
        %v616 = vmul.f32 %v612, 0.00390625
        %v617 = vmul.f32 %v450, %v613
        %v618 = vmul.f32 %v451, %v614
        %v619 = vmul.f32 %v452, %v615
        %v620 = vmul.f32 %v453, %v616
        %v621 = vsel %vm478, %v617, 0.0
        %v622 = vsel %vm478, %v618, 0.0
        %v623 = vadd.f32 %v621, %v622
        %v624 = vsel %vm478, %v619, 0.0
        %v625 = vadd.f32 %v623, %v624
        %v626 = vsel %vm478, %v620, 0.0
        %v627 = vadd.f32 %v625, %v626
        %v628 = vrot.slane %v627, 4
        %v629 = vadd.f32 %v627, %v628
        %v630 = vrot.slane %v629, 2
        %v631 = vadd.f32 %v629, %v630
        %v632 = vrot.slane %v631, 1
        %v633 = vadd.f32 %v631, %v632
        %v634 = vmax.f32 %v633, 0.0
        %v635 = vmul.f32 %v454, %v634
        %v636 = vmul.f32 %v455, %v634
        %v637 = vmul.f32 %v456, %v634
        %v638 = vmul.f32 %v457, %v634
        %v639 = vsel %vm478, %v635, 0.0
        %640 = vadd.xlane.f32.xlu0 %v639
        %v641 = vpop.xlane.xlu0 %640
        %v642 = vsel %vm478, %v636, 0.0
        %643 = vadd.xlane.f32.xlu0 %v642
        %v644 = vpop.xlane.xlu0 %643
        %v645 = vsel %vm478, %v637, 0.0
        %646 = vadd.xlane.f32.xlu0 %v645
        %v647 = vpop.xlane.xlu0 %646
        %v648 = vsel %vm478, %v638, 0.0
        %649 = vadd.xlane.f32.xlu0 %v648
        %v650 = vpop.xlane.xlu0 %649
        %v651 = vxor.u32 %v641, 2147483648
        %v652 = vxor.u32 %v644, 2147483648
        %v653 = vxor.u32 %v647, 2147483648
        %v654 = vxor.u32 %v650, 2147483648
        %v655 = vmul.f32 %v651, 1.442695
        %v656 = vpow.pop %v655
        %v657 = vmul.f32 %v652, 1.442695
        %v658 = vpow.pop %v657
        %v659 = vmul.f32 %v653, 1.442695
        %v660 = vpow.pop %v659
        %v661 = vmul.f32 %v654, 1.442695
        %v662 = vpow.pop %v661
        %v663 = vadd.f32 %v656, 1.0
        %v664 = vadd.f32 %v658, 1.0
        %v665 = vadd.f32 %v660, 1.0
        %v666 = vadd.f32 %v662, 1.0
        %v667 = vrcp.pop %v663
        %v668 = vmul.f32 %v663, %v667
        %v669 = vsub.f32 1.0, %v668
        %v670 = vmul.f32 %v667, %v669
        %v671 = vadd.f32 %v667, %v670
        %vm672 = vweird.f32 %v663
        %vm673 = vweird.f32 %v667
        %vm674 = vmor %vm672, %vm673
        %v675 = vsel %vm674, %v667, %v671
        %v676 = vand.u32 2147483647, %v663
        %vm677 = vcmp.eq.f32.partialorder %v676, 8.507059e+37
        %v678 = vand.u32 %v663, 2147483648
        %v679 = vor.u32 1.1754944e-38, %v678
        %v680 = vsel %vm677, %v679, %v675
        %v681 = vmul.f32 1.0, %v680
        %v682 = vrcp.pop %v664
        %v683 = vmul.f32 %v664, %v682
        %v684 = vsub.f32 1.0, %v683
        %v685 = vmul.f32 %v682, %v684
        %v686 = vadd.f32 %v682, %v685
        %vm687 = vweird.f32 %v664
        %vm688 = vweird.f32 %v682
        %vm689 = vmor %vm687, %vm688
        %v690 = vsel %vm689, %v682, %v686
        %v691 = vand.u32 2147483647, %v664
        %vm692 = vcmp.eq.f32.partialorder %v691, 8.507059e+37
        %v693 = vand.u32 %v664, 2147483648
        %v694 = vor.u32 1.1754944e-38, %v693
        %v695 = vsel %vm692, %v694, %v690
        %v696 = vmul.f32 1.0, %v695
        %v697 = vrcp.pop %v665
        %v698 = vmul.f32 %v665, %v697
        %v699 = vsub.f32 1.0, %v698
        %v700 = vmul.f32 %v697, %v699
        %v701 = vadd.f32 %v697, %v700
        %vm702 = vweird.f32 %v665
        %vm703 = vweird.f32 %v697
        %vm704 = vmor %vm702, %vm703
        %v705 = vsel %vm704, %v697, %v701
        %v706 = vand.u32 2147483647, %v665
        %vm707 = vcmp.eq.f32.partialorder %v706, 8.507059e+37
        %v708 = vand.u32 %v665, 2147483648
        %v709 = vor.u32 1.1754944e-38, %v708
        %v710 = vsel %vm707, %v709, %v705
        %v711 = vmul.f32 1.0, %v710
        %v712 = vrcp.pop %v666
        %v713 = vmul.f32 %v666, %v712
        %v714 = vsub.f32 1.0, %v713
        %v715 = vmul.f32 %v712, %v714
        %v716 = vadd.f32 %v712, %v715
        %vm717 = vweird.f32 %v666
        %vm718 = vweird.f32 %v712
        %vm719 = vmor %vm717, %vm718
        %v720 = vsel %vm719, %v712, %v716
        %v721 = vand.u32 2147483647, %v666
        %vm722 = vcmp.eq.f32.partialorder %v721, 8.507059e+37
        %v723 = vand.u32 %v666, 2147483648
        %v724 = vor.u32 1.1754944e-38, %v723
        %v725 = vsel %vm722, %v724, %v720
        %v726 = vmul.f32 1.0, %v725
        %v727 = vmul.f32 %v410, %v681
        %v728 = vmul.f32 %v439, %v681
        %v729 = vmul.f32 %v413, %v696
        %v730 = vmul.f32 %v442, %v696
        %v731 = vmul.f32 %v416, %v711
        %v732 = vmul.f32 %v445, %v711
        %v733 = vmul.f32 %v419, %v726
        %v734 = vmul.f32 %v448, %v726
        %s735 = scalar_lea.vmem %s243, 64 [#allocation2]
        %736 = vst [vmem:[%s735] sm:$0xff] %v727
        %737 = vst [vmem:[%s735 + $0x8] sm:$0xff] %v728
        %738 = vst [vmem:[%s735 + $0x10] sm:$0xff] %v729
        %739 = vst [vmem:[%s735 + $0x18] sm:$0xff] %v730
        %740 = vst [vmem:[%s735 + $0x20] sm:$0xff] %v731
        %741 = vst [vmem:[%s735 + $0x28] sm:$0xff] %v732
        %742 = vst [vmem:[%s735 + $0x30] sm:$0xff] %v733
        %743 = vst [vmem:[%s735 + $0x38] sm:$0xff] %v734
        %s744 = sand.u32 %s144, 1
        %s745 = sand.u32 %s144, 1
        %s746 = smul.addr %s745, 128
        %s747 = scalar_lea.vmem [#allocation2], %s746
        // Predicated region
        $region41: #{group_conv_layer_with_attention.1} parent=39 // pred_check
          %p748 = pneg %p154
        $region42: #{group_conv_layer_with_attention.1} parent=39 // pred_check_branch
          %750 = sbr.rel (%p748) target = $region44
        $region43: #{group_conv_layer_with_attention.1} parent=39 // pred_region
          %s751 = smul.u32 4, %s16
          %s752 = smul.addr %s751, 2
          %s753 = smul.addr %s752, 8
          %s754 = scalar_lea.vmem %s5, %s753
          // Predicated region
          $region45: #{group_conv_layer_with_attention.1} parent=43 // pred_check
            _
          $region46: #{group_conv_layer_with_attention.1} parent=43 // pred_check_branch
            %756 = sbr.rel (0) target = $region48
          $region47: #{group_conv_layer_with_attention.1} parent=43 // pred_region
            // Predicated region
            $region49: #{group_conv_layer_with_attention.1} parent=47 // pred_check
              _
            $region50: #{group_conv_layer_with_attention.1} parent=47 // pred_check_branch
              %758 = sbr.rel (0) target = $region52
            $region51: #{group_conv_layer_with_attention.1} parent=47 // pred_region
              loop: start=0, step=1, limit=1
              $region53: #{group_conv_layer_with_attention.1} parent=51 // loop_pre_header
                _
              $region54: #{group_conv_layer_with_attention.1} parent=51 // loop_header
                %s760 = sphi 0, %s764
                %p761 = scmp.ge.s32.totalorder %s760, 1
                %s765 = sphi %s747, %s747
                %s766 = sphi %s754, %s754
              $region55: #{group_conv_layer_with_attention.1} parent=51 // loop_header_branch
                %763 = sbr.rel (%p761) target = $region59
              $region56: #{group_conv_layer_with_attention.1} parent=51 // loop_body
                %v767 = vld [vmem:[%s765] sm:$0xff]
                %768 = vst [vmem:[%s766] sm:$0xff] %v767
                %v769 = vld [vmem:[%s765 + $0x8] sm:$0xff]
                %770 = vst [vmem:[%s766 + $0x8] sm:$0xff] %v769
                %v771 = vld [vmem:[%s765 + $0x10] sm:$0xff]
                %772 = vst [vmem:[%s766 + $0x10] sm:$0xff] %v771
                %v773 = vld [vmem:[%s765 + $0x18] sm:$0xff]
                %774 = vst [vmem:[%s766 + $0x18] sm:$0xff] %v773
                %v775 = vld [vmem:[%s765 + $0x20] sm:$0xff]
                %776 = vst [vmem:[%s766 + $0x20] sm:$0xff] %v775
                %v777 = vld [vmem:[%s765 + $0x28] sm:$0xff]
                %778 = vst [vmem:[%s766 + $0x28] sm:$0xff] %v777
                %v779 = vld [vmem:[%s765 + $0x30] sm:$0xff]
                %780 = vst [vmem:[%s766 + $0x30] sm:$0xff] %v779
                %v781 = vld [vmem:[%s765 + $0x38] sm:$0xff]
                %782 = vst [vmem:[%s766 + $0x38] sm:$0xff] %v781
                %v783 = vld [vmem:[%s765 + $0x40] sm:$0xff]
                %784 = vst [vmem:[%s766 + $0x80] sm:$0xff] %v783
                %v785 = vld [vmem:[%s765 + $0x48] sm:$0xff]
                %786 = vst [vmem:[%s766 + $0x88] sm:$0xff] %v785
                %v787 = vld [vmem:[%s765 + $0x50] sm:$0xff]
                %788 = vst [vmem:[%s766 + $0x90] sm:$0xff] %v787
                %v789 = vld [vmem:[%s765 + $0x58] sm:$0xff]
                %790 = vst [vmem:[%s766 + $0x98] sm:$0xff] %v789
                %v791 = vld [vmem:[%s765 + $0x60] sm:$0xff]
                %792 = vst [vmem:[%s766 + $0xa0] sm:$0xff] %v791
                %v793 = vld [vmem:[%s765 + $0x68] sm:$0xff]
                %794 = vst [vmem:[%s766 + $0xa8] sm:$0xff] %v793
                %v795 = vld [vmem:[%s765 + $0x70] sm:$0xff]
                %796 = vst [vmem:[%s766 + $0xb0] sm:$0xff] %v795
                %v797 = vld [vmem:[%s765 + $0x78] sm:$0xff]
                %798 = vst [vmem:[%s766 + $0xb8] sm:$0xff] %v797
              $region57: #{group_conv_layer_with_attention.1} parent=51 // loop_footer
                %s764 = sadd.s32 1, %s760
              $region58: #{group_conv_layer_with_attention.1} parent=51 // loop_footer_branch
                %759 = sbr.rel target = $region54
              $region59: #{group_conv_layer_with_attention.1} parent=51 // loop_exit
                _
            $region52: #{group_conv_layer_with_attention.1} parent=47 // pred_fallthru
              _
            // Predicated region
            $region60: #{group_conv_layer_with_attention.1} parent=47 // pred_check
              _
            $region61: #{group_conv_layer_with_attention.1} parent=47 // pred_check_branch
              %800 = sbr.rel target = $region63
            $region62: #{group_conv_layer_with_attention.1} parent=47 // pred_region
              _
            $region63: #{group_conv_layer_with_attention.1} parent=47 // pred_fallthru
              _
          $region48: #{group_conv_layer_with_attention.1} parent=43 // pred_fallthru
            _
          %801 = vnop
        $region44: #{group_conv_layer_with_attention.1} parent=39 // pred_fallthru
          _
      $region40: #{group_conv_layer_with_attention.1} parent=5 // pred_fallthru
        _
      %p802 = scmp.le.s32.totalorder 2, %s11
      // Predicated region
      $region64: #{group_conv_layer_with_attention.1} parent=5 // pred_check
        %p803 = pneg %p802
      $region65: #{group_conv_layer_with_attention.1} parent=5 // pred_check_branch
        %805 = sbr.rel (%p803) target = $region67
      $region66: #{group_conv_layer_with_attention.1} parent=5 // pred_region
        %s806 = ssub.s32 %s11, 2
        // Predicated region
        $region68: #{group_conv_layer_with_attention.1} parent=66 // pred_check
          %p807 = pneg %p160
        $region69: #{group_conv_layer_with_attention.1} parent=66 // pred_check_branch
          %809 = sbr.rel (%p807) target = $region71
        $region70: #{group_conv_layer_with_attention.1} parent=66 // pred_region
          %s810 = sand.u32 %s145, 1
          %s811 = sand.u32 %s145, 1
          %s812 = smul.addr %s811, 128
          %s813 = scalar_lea.vmem [#allocation2], %s812
        $region71: #{group_conv_layer_with_attention.1} parent=66 // pred_fallthru
          _
      $region67: #{group_conv_layer_with_attention.1} parent=5 // pred_fallthru
        _
    $region6: #{group_conv_layer_with_attention.1} parent=1 // loop_footer
      %s15 = sadd.s32 1, %s11
    $region7: #{group_conv_layer_with_attention.1} parent=1 // loop_footer_branch
      %10 = sbr.rel target = $region3
    $region8: #{group_conv_layer_with_attention.1} parent=1 // loop_exit
      _

</llo_original>
